<compile_context>
chip_gen: v6e
topology: v6e:2x2x1
jax: 0.10.0
libtpu: 0.0.40
codegen_flags: <defaults>
</compile_context>

<pallas_src>
import functools

import jax
import jax.numpy as jnp
from jax.experimental import pallas as pl
from jax.experimental.pallas import tpu as pltpu


def _round_up(x, m):
    return ((x + m - 1) // m) * m


def prepare_params(params):
    """One-time (parameter-load-time) weight prep.

    Input: PyTorch nn.Linear convention ('wq','bq','wk','bk','wv','bv'),
           W of shape (dim, dim) applied as y = x @ W.T + b.
    Output: {'w': (C, 3*Cp) bf16, 'b': (1, 3*Cp) f32, 'dim': C, 'dim_padded': Cp}
      * transposed to (in, out) so the kernel does x @ w
      * 1/sqrt(dim) attention scale folded into the Q weight AND bias
      * output channels zero-padded to Cp (lane-dense q/k/v, unmasked stores)
      * Q, K, V fused into a single weight / bias operand (fewer DMAs).
    """
    C = params["wq"].shape[0]
    Cp = _round_up(C, 128)
    scale = 1.0 / (C ** 0.5)

    def pad_out(w):  # (out=C, in=C) torch -> (C_in, Cp_out)
        return jnp.pad(w.T, ((0, 0), (0, Cp - C)))

    w = jnp.concatenate(
        [pad_out(params["wq"]) * scale, pad_out(params["wk"]), pad_out(params["wv"])],
        axis=1,
    ).astype(jnp.bfloat16)
    b = jnp.concatenate(
        [jnp.pad(params["bq"] * scale, (0, Cp - C)),
         jnp.pad(params["bk"], (0, Cp - C)),
         jnp.pad(params["bv"], (0, Cp - C))]
    ).reshape(1, 3 * Cp).astype(jnp.float32)
    return {"w": w, "b": b, "dim": C, "dim_padded": Cp}


def _cross_attn_kernel(img_ref, srm_ref, w_ref, b_ref, out_ref, *, channel_major_out):
    """One grid step: `Bb` batch elements x `Nq` query tokens (full key axis).

    img_ref : (Bb, C, Nq)   native channel-major block (query side)
    srm_ref : (Bb, C, Nk)   native channel-major block (key/value side, full N)
    w_ref   : (C, 3*Cp)     bf16  [Wq*scale | Wk | Wv], zero-padded channels
    b_ref   : (1, 3*Cp)     f32   [bq*scale | bk | bv]
    out_ref : (Bb, Nq, Cp) or (Bb, Cp, Nq)  bf16 (padded channels are exactly 0)
    """
    Bb, C, Nq = img_ref.shape
    Nk = srm_ref.shape[2]
    Cp = w_ref.shape[1] // 3

    # Cast to bf16 FIRST, then do the channel->token layout change in VMEM
    # (half the XLU bytes, half the vreg pressure of the big intermediate).
    x = jnp.swapaxes(img_ref[...].astype(jnp.bfloat16), 1, 2).reshape(Bb * Nq, C)
    s = jnp.swapaxes(srm_ref[...].astype(jnp.bfloat16), 1, 2).reshape(Bb * Nk, C)

    wq = w_ref[:, :Cp]            # (C, Cp)   scale folded in
    wkv = w_ref[:, Cp:]           # (C, 2*Cp) fused K|V
    bq = b_ref[:, :Cp]
    bkv = b_ref[:, Cp:]

    # Projections: bf16 MXU matmuls, f32 accumulation, lane-dense (Cp) outputs.
    q = jnp.dot(x, wq, preferred_element_type=jnp.float32) + bq
    kv = jnp.dot(s, wkv, preferred_element_type=jnp.float32) + bkv

    q = q.reshape(Bb, Nq, Cp).astype(jnp.bfloat16)
    k = kv[:, :Cp].reshape(Bb, Nk, Cp).astype(jnp.bfloat16)
    v = kv[:, Cp:].reshape(Bb, Nk, Cp).astype(jnp.bfloat16)

    # Attention scores: contract the channel axis directly (no explicit k.T).
    scores = jnp.einsum("bqc,bkc->bqk", q, k, preferred_element_type=jnp.float32)

    # Numerically-stable softmax in f32 (matches torch.nn.Softmax(dim=-1)).
    scores = scores - jnp.max(scores, axis=-1, keepdims=True)
    p = jnp.exp(scores)
    p = p * pl.reciprocal(jnp.sum(p, axis=-1, keepdims=True), approx=False)

    # Attention-weighted values; padded channels stay exactly 0.
    fused = jnp.einsum("bqk,bkc->bqc", p.astype(jnp.bfloat16), v,
                       preferred_element_type=jnp.float32)
    if channel_major_out:
        fused = jnp.swapaxes(fused, 1, 2)      # (Bb, Cp, Nq), lane-dense for N>=128
    out_ref[...] = fused.astype(out_ref.dtype)


def _step_vmem_bytes(Bb, C, N, Nq, Cp):
    """Rough per-grid-step VMEM footprint (double-buffered I/O + intermediates)."""
    dbl = 2
    in_bytes = dbl * (Bb * C * Nq + Bb * C * N) * 4          # img + srm (f32)
    out_bytes = dbl * Bb * Nq * Cp * 2                        # bf16 output
    w_bytes = C * 3 * Cp * 2 + 3 * Cp * 4                     # fused weights/bias
    inter = (2 * Bb * N * C * 2                               # x, s (bf16)
             + 3 * Bb * N * Cp * (4 + 2)                      # q/kv f32 + q/k/v bf16
             + Bb * Nq * N * 10                               # scores f32, p f32+bf16
             + Bb * Nq * Cp * 4)                              # fused f32
    return in_bytes + out_bytes + w_bytes + inter


def cross_attention_block(img_features, srm_features, params, *,
                          batch_block=None, q_block=None):
    """Pallas implementation of CrossAttentionBlock.forward.

    img_features, srm_features: (B, C, H, W) float32, W must be 1 (see layout note).
    params: either raw PyTorch-style params ('wq','bq','wk','bk','wv','bv') or the
            hoisted output of prepare_params() (recommended: call it once).
    batch_block / q_block: tiling overrides; auto-chosen when None.
    Returns: (B, C, H, W) fused feature map (input dtype).
    """
    B, C, H, W = img_features.shape
    assert W == 1, "Reference PyTorch forward only type-checks for W == 1."
    assert srm_features.shape == (B, C, H, W), \
        "srm_features must match img_features (same channel count / spatial dims)."
    N = H * W
    assert N % 8 == 0, "Token count must be sublane-aligned (multiple of 8)."

    if "w" not in params:      # raw params -> prep here (hoist via prepare_params)
        params = prepare_params(params)
    assert params["dim"] == C
    Cp = params["dim_padded"]

    # Free reshapes only — no wrapper HBM transpose of the activations.
    img_cn = img_features.reshape(B, C, N)
    srm_cn = srm_features.reshape(B, C, N)

    # Query-axis tiling: only when the (N, N) scores tile gets large and N is
    # lane-aligned (keeps both v7x TensorCores busy, bounds VMEM).
    if q_block is None:
        if N % 128 == 0 and N * N * 8 > (4 << 20):
            q_block = 256 if N % 256 == 0 else 128
        else:
            q_block = N
    assert N % q_block == 0 and (q_block == N or q_block % 128 == 0)

    # Batch tiling: single step only while the whole problem is tiny; otherwise
    # keep >= 4 grid steps so double-buffering overlaps DMA with compute.
    if batch_block is None:
        total_io = 2 * B * C * N * 4 + B * N * Cp * 2
        small = total_io <= (2 << 20)
        budget = 4 << 20
        batch_block = 1
        for cand in range(B, 0, -1):
            if B % cand:
                continue
            steps = (B // cand) * (N // q_block)
            if _step_vmem_bytes(cand, C, N, q_block, Cp) > budget:
                continue
            if not small and steps < min(4, B * (N // q_block)):
                continue
            batch_block = cand
            break
    assert B % batch_block == 0
    grid = (B // batch_block, N // q_block)

    # Lane-dense output choice: channel-major (B, Cp, N) avoids the wrapper's
    # slice+transpose pass when N itself is lane-aligned; otherwise token-major
    # (B, N, Cp) keeps the padded channel axis on lanes (unmasked stores).
    channel_major_out = (N % 128 == 0)

    est = _step_vmem_bytes(batch_block, C, N, q_block, Cp)
    vmem_limit = int(min(64 << 20, max(32 << 20, 2 * est)))

    img_spec = pl.BlockSpec((batch_block, C, q_block), lambda b, q: (b, 0, q))
    srm_spec = pl.BlockSpec((batch_block, C, N), lambda b, q: (b, 0, 0))
    w_spec = pl.BlockSpec((C, 3 * Cp), lambda b, q: (0, 0))
    b_spec = pl.BlockSpec((1, 3 * Cp), lambda b, q: (0, 0))
    if channel_major_out:
        out_shape = jax.ShapeDtypeStruct((B, Cp, N), jnp.bfloat16)
        out_spec = pl.BlockSpec((batch_block, Cp, q_block), lambda b, q: (b, 0, q))
    else:
        out_shape = jax.ShapeDtypeStruct((B, N, Cp), jnp.bfloat16)
        out_spec = pl.BlockSpec((batch_block, q_block, Cp), lambda b, q: (b, q, 0))

    fused_pad = pl.pallas_call(
        functools.partial(_cross_attn_kernel, channel_major_out=channel_major_out),
        out_shape=out_shape,
        grid=grid,
        in_specs=[img_spec, srm_spec, w_spec, b_spec],
        out_specs=out_spec,
        compiler_params=pltpu.CompilerParams(
            dimension_semantics=("parallel", "parallel"),
            vmem_limit_bytes=vmem_limit),
    )(img_cn, srm_cn, params["w"], params["b"])

    if channel_major_out:
        out = fused_pad[:, :C, :].reshape(B, C, H, W)
    else:
        out = fused_pad[:, :, :C].transpose(0, 2, 1).reshape(B, C, H, W)
    return out.astype(img_features.dtype)


def _reference(img_features, srm_features, raw_params):
    """Pure-JAX f32 reference replicating the PyTorch forward exactly."""
    B, C, H, W = img_features.shape
    img = img_features.reshape(B, C, -1).transpose(0, 2, 1)           # (B, H*W, C)
    srm = srm_features.reshape(B, srm_features.shape[1], -1).transpose(0, 2, 1)
    q = (img.reshape(B * H, C) @ raw_params["wq"].T + raw_params["bq"]).reshape(B, H, -1)
    k = srm @ raw_params["wk"].T + raw_params["bk"]
    v = srm @ raw_params["wv"].T + raw_params["bv"]
    scores = jax.nn.softmax(jnp.einsum("bqc,bkc->bqk", q, k) / (C ** 0.5), axis=-1)
    fused = jnp.einsum("bqk,bkc->bqc", scores, v)
    return fused.transpose(0, 2, 1).reshape(B, C, H, W)


def init_params(key, dim):
    ks = jax.random.split(key, 6)
    bound = 1.0 / (dim ** 0.5)
    return {
        "wq": jax.random.uniform(ks[0], (dim, dim), jnp.float32, -bound, bound),
        "bq": jax.random.uniform(ks[1], (dim,), jnp.float32, -bound, bound),
        "wk": jax.random.uniform(ks[2], (dim, dim), jnp.float32, -bound, bound),
        "bk": jax.random.uniform(ks[3], (dim,), jnp.float32, -bound, bound),
        "wv": jax.random.uniform(ks[4], (dim, dim), jnp.float32, -bound, bound),
        "bv": jax.random.uniform(ks[5], (dim,), jnp.float32, -bound, bound),
    }


if __name__ == "__main__":
    key = jax.random.PRNGKey(0)
    B, C, H, W = 2, 32, 16, 1   # W=1 required by the reference reshape semantics
    k_img, k_srm, k_par = jax.random.split(key, 3)

    img = jax.random.normal(k_img, (B, C, H, W), jnp.float32)
    srm = jax.random.normal(k_srm, (B, C, H, W), jnp.float32)
    raw_params = init_params(k_par, C)

    # Weight prep hoisted out of the forward call (one-time, parameter-load time).
    prepped = prepare_params(raw_params)

    out = cross_attention_block(img, srm, prepped)
    out = jax.block_until_ready(out)

    ref = _reference(img, srm, raw_params)
    assert out.shape == (B, C, H, W)
    # bf16 MXU inputs + bf16 output store -> loosened tolerance vs the f32 reference.
    assert jnp.allclose(out, ref, atol=5e-2, rtol=5e-2), "mismatch vs reference"

    print("KERNEL_OK")
</pallas_src>

<mosaic_0001>
module attributes {stable_mosaic.version = 11 : i64} {
  func.func @_cross_attn_kernel(%arg0: i32, %arg1: i32, %arg2: memref<2x32x16xf32, #tpu.memory_space<vmem>>, %arg3: memref<2x32x16xf32, #tpu.memory_space<vmem>>, %arg4: memref<32x384xbf16, #tpu.memory_space<vmem>>, %arg5: memref<1x384xf32, #tpu.memory_space<vmem>>, %arg6: memref<2x16x128xbf16, #tpu.memory_space<vmem>>) attributes {dimension_semantics = [#tpu.dimension_semantics<parallel>, #tpu.dimension_semantics<parallel>], iteration_bounds = array<i64: 1, 1>, scalar_prefetch = 0 : i64, scratch_operands = 0 : i64, tpu.core_type = #tpu.core_type<tc>, window_params = [{transform_indices = @transform_0, window_bounds = array<i64: 2, 32, 16>}, {transform_indices = @transform_1, window_bounds = array<i64: 2, 32, 16>}, {pipeline_mode = #tpu.pipeline_mode<synchronous>, transform_indices = @transform_2, window_bounds = array<i64: 32, 384>}, {pipeline_mode = #tpu.pipeline_mode<synchronous>, transform_indices = @transform_3, window_bounds = array<i64: 1, 384>}, {transform_indices = @transform_4, window_bounds = array<i64: 2, 16, 128>}]} {
    %c0 = arith.constant 0 : index
    %c0_0 = arith.constant 0 : index
    %c0_1 = arith.constant 0 : index
    %0 = vector.load %arg2[%c0, %c0_0, %c0_1] : memref<2x32x16xf32, #tpu.memory_space<vmem>>, vector<2x32x16xf32>
    %1 = arith.truncf %0 : vector<2x32x16xf32> to vector<2x32x16xbf16>
    %2 = tpu.transpose %1, [0, 2, 1] : vector<2x32x16xbf16> -> vector<2x16x32xbf16>
    %3 = vector.shape_cast %2 : vector<2x16x32xbf16> to vector<32x32xbf16>
    %c0_2 = arith.constant 0 : index
    %c0_3 = arith.constant 0 : index
    %c0_4 = arith.constant 0 : index
    %4 = vector.load %arg3[%c0_2, %c0_3, %c0_4] : memref<2x32x16xf32, #tpu.memory_space<vmem>>, vector<2x32x16xf32>
    %5 = arith.truncf %4 : vector<2x32x16xf32> to vector<2x32x16xbf16>
    %6 = tpu.transpose %5, [0, 2, 1] : vector<2x32x16xbf16> -> vector<2x16x32xbf16>
    %7 = vector.shape_cast %6 : vector<2x16x32xbf16> to vector<32x32xbf16>
    %c0_5 = arith.constant 0 : index
    %c0_6 = arith.constant 0 : index
    %8 = vector.load %arg4[%c0_5, %c0_6] : memref<32x384xbf16, #tpu.memory_space<vmem>>, vector<32x128xbf16>
    %c0_7 = arith.constant 0 : index
    %c128 = arith.constant 128 : index
    %9 = vector.load %arg4[%c0_7, %c128] : memref<32x384xbf16, #tpu.memory_space<vmem>>, vector<32x256xbf16>
    %c0_8 = arith.constant 0 : index
    %c0_9 = arith.constant 0 : index
    %10 = vector.load %arg5[%c0_8, %c0_9] : memref<1x384xf32, #tpu.memory_space<vmem>>, vector<1x128xf32>
    %c0_10 = arith.constant 0 : index
    %c128_11 = arith.constant 128 : index
    %11 = vector.load %arg5[%c0_10, %c128_11] : memref<1x384xf32, #tpu.memory_space<vmem>>, vector<1x256xf32>
    %cst = arith.constant dense<0.000000e+00> : vector<32x128xf32>
    %12 = tpu.matmul %3, %8, %cst {dimension_numbers = #tpu.dot_dimension_numbers<[1], [0], [0], [1], [0, 0, 1, 1], [], []>} : vector<32x32xbf16>, vector<32x128xbf16>, vector<32x128xf32> -> vector<32x128xf32>
    %13 = vector.broadcast %10 : vector<1x128xf32> to vector<32x128xf32>
    %14 = arith.addf %12, %13 : vector<32x128xf32>
    %cst_12 = arith.constant dense<0.000000e+00> : vector<32x256xf32>
    %15 = tpu.matmul %7, %9, %cst_12 {dimension_numbers = #tpu.dot_dimension_numbers<[1], [0], [0], [1], [0, 0, 1, 1], [], []>} : vector<32x32xbf16>, vector<32x256xbf16>, vector<32x256xf32> -> vector<32x256xf32>
    %16 = vector.broadcast %11 : vector<1x256xf32> to vector<32x256xf32>
    %17 = arith.addf %15, %16 : vector<32x256xf32>
    %18 = vector.shape_cast %14 : vector<32x128xf32> to vector<2x16x128xf32>
    %19 = arith.truncf %18 : vector<2x16x128xf32> to vector<2x16x128xbf16>
    %20 = vector.extract_strided_slice %17 {offsets = [0, 0], sizes = [32, 128], strides = [1, 1]} : vector<32x256xf32> to vector<32x128xf32>
    %21 = vector.shape_cast %20 : vector<32x128xf32> to vector<2x16x128xf32>
    %22 = arith.truncf %21 : vector<2x16x128xf32> to vector<2x16x128xbf16>
    %23 = vector.extract_strided_slice %17 {offsets = [0, 128], sizes = [32, 128], strides = [1, 1]} : vector<32x256xf32> to vector<32x128xf32>
    %24 = vector.shape_cast %23 : vector<32x128xf32> to vector<2x16x128xf32>
    %25 = arith.truncf %24 : vector<2x16x128xf32> to vector<2x16x128xbf16>
    "tpu.trace_start"() <{level = 10 : i32, message = "bqc,bkc->bqk"}> : () -> ()
    %cst_13 = arith.constant dense<0.000000e+00> : vector<2x16x16xf32>
    %26 = tpu.matmul %19, %22, %cst_13 {dimension_numbers = #tpu.dot_dimension_numbers<[2], [2], [1], [1], [0, 0, 0, 1, 1, 1], [0], [0]>} : vector<2x16x128xbf16>, vector<2x16x128xbf16>, vector<2x16x16xf32> -> vector<2x16x16xf32>
    "tpu.trace_stop"() : () -> ()
    %cst_14 = arith.constant dense<0xFF800000> : vector<2x16xf32>
    %27 = vector.multi_reduction <maximumf>, %26, %cst_14 [2] : vector<2x16x16xf32> to vector<2x16xf32>
    %28 = vector.shape_cast %27 : vector<2x16xf32> to vector<2x16x1xf32>
    %29 = vector.broadcast %28 : vector<2x16x1xf32> to vector<2x16x16xf32>
    %30 = arith.subf %26, %29 : vector<2x16x16xf32>
    %31 = math.exp %30 : vector<2x16x16xf32>
    %cst_15 = arith.constant dense<0.000000e+00> : vector<2x16xf32>
    %32 = vector.multi_reduction <add>, %31, %cst_15 [2] : vector<2x16x16xf32> to vector<2x16xf32>
    %33 = vector.shape_cast %32 : vector<2x16xf32> to vector<2x16x1xf32>
    %34 = tpu.reciprocal %33 : vector<2x16x1xf32> -> vector<2x16x1xf32>
    %35 = vector.broadcast %34 : vector<2x16x1xf32> to vector<2x16x16xf32>
    %36 = arith.mulf %31, %35 : vector<2x16x16xf32>
    %37 = arith.truncf %36 : vector<2x16x16xf32> to vector<2x16x16xbf16>
    "tpu.trace_start"() <{level = 10 : i32, message = "bqk,bkc->bqc"}> : () -> ()
    %cst_16 = arith.constant dense<0.000000e+00> : vector<2x16x128xf32>
    %38 = tpu.matmul %37, %25, %cst_16 {dimension_numbers = #tpu.dot_dimension_numbers<[2], [1], [1], [2], [0, 0, 0, 1, 1, 2], [0], [0]>} : vector<2x16x16xbf16>, vector<2x16x128xbf16>, vector<2x16x128xf32> -> vector<2x16x128xf32>
    "tpu.trace_stop"() : () -> ()
    %39 = arith.truncf %38 : vector<2x16x128xf32> to vector<2x16x128xbf16>
    %c0_17 = arith.constant 0 : index
    %c0_18 = arith.constant 0 : index
    %c0_19 = arith.constant 0 : index
    %40 = vector.load %arg6[%c0_17, %c0_18, %c0_19] : memref<2x16x128xbf16, #tpu.memory_space<vmem>>, vector<2x16x128xbf16>
    tpu.vector_store %arg6[%c0_17, %c0_18, %c0_19], %39 {strides = array<i32>} : memref<2x16x128xbf16, #tpu.memory_space<vmem>>, vector<2x16x128xbf16>,
    return
  }
  func.func @transform_0(%arg0: i32, %arg1: i32) -> (i32, i32, i32) {
    %c0_i32 = arith.constant 0 : i32
    %c0_i32_0 = arith.constant 0 : i32
    return %arg0, %c0_i32, %arg1 : i32, i32, i32
  }
  func.func @transform_1(%arg0: i32, %arg1: i32) -> (i32, i32, i32) {
    %c0_i32 = arith.constant 0 : i32
    %c0_i32_0 = arith.constant 0 : i32
    %c0_i32_1 = arith.constant 0 : i32
    return %arg0, %c0_i32, %c0_i32_0 : i32, i32, i32
  }
  func.func @transform_2(%arg0: i32, %arg1: i32) -> (i32, i32) {
    %c0_i32 = arith.constant 0 : i32
    %c0_i32_0 = arith.constant 0 : i32
    %c0_i32_1 = arith.constant 0 : i32
    return %c0_i32, %c0_i32_0 : i32, i32
  }
  func.func @transform_3(%arg0: i32, %arg1: i32) -> (i32, i32) {
    %c0_i32 = arith.constant 0 : i32
    %c0_i32_0 = arith.constant 0 : i32
    %c0_i32_1 = arith.constant 0 : i32
    return %c0_i32, %c0_i32_0 : i32, i32
  }
  func.func @transform_4(%arg0: i32, %arg1: i32) -> (i32, i32, i32) {
    %c0_i32 = arith.constant 0 : i32
    %c0_i32_0 = arith.constant 0 : i32
    return %arg0, %arg1, %c0_i32 : i32, i32, i32
  }
}

</mosaic_0001>

<llo_original>
// kernel: tpu_custom_call.1
$region0: #{tpu_custom_call.1}
  #allocation0 [shape = 'u32[]', space=smem, size = 0x4, offset = 0x4, fixed_abs, tag = 'smem constant byte address 0x4 - core index']
  #allocation1 [shape = 'u32[144,128]{1,0:T(1,128)}', space=vmem, size = 0x12000, scoped, tag = 'internal scratch']
  %s0 = inlined_call_operand.vmem [shape: f32[2,32,16], index: 0, kind: input, shape index: {}]
  %s1 = inlined_call_operand.vmem [shape: f32[2,32,16], index: 1, kind: input, shape index: {}]
  %s2 = inlined_call_operand.vmem [shape: bf16[32,384], index: 2, kind: input, shape index: {}]
  %s3 = inlined_call_operand.vmem [shape: f32[1,384], index: 3, kind: input, shape index: {}]
  %s4 = inlined_call_operand.hbm [shape: bf16[2,16,128], index: 4, kind: output, shape index: {}]
  %s5 = sld [smem:[#allocation0]]
  $region26: #{tpu_custom_call.1} parent=0
    _
  %s7 = ssub.s32 1, %s5
  %s8 = scalar_select 0, %s7, %s5
  $region1: #{tpu_custom_call.1} parent=0
    #allocation2 [shape = 'u8[8192]{0}', space=vmem, size = 0x2000, scoped, tag = 'output window, operand 0, single buffered']
    #allocation3 [shape = 's32[1]{0}', space=sflag, size = 0x4, scoped, tag = 'scoped memory for tpu_custom_call.1']
    %9 = vsyncpa [#allocation3], 0
    // Predicated region
    $region2: #{tpu_custom_call.1} parent=1 // pred_check
      _
    $region3: #{tpu_custom_call.1} parent=1 // pred_check_branch
      %11 = sbr.rel (0) target = $region5
    $region4: #{tpu_custom_call.1} parent=1 // pred_region
      _
    $region5: #{tpu_custom_call.1} parent=1 // pred_fallthru
      _
    // Predicated region
    $region6: #{tpu_custom_call.1} parent=1 // pred_check
      _
    $region7: #{tpu_custom_call.1} parent=1 // pred_check_branch
      %13 = sbr.rel (0) target = $region9
    $region8: #{tpu_custom_call.1} parent=1 // pred_region
      _
    $region9: #{tpu_custom_call.1} parent=1 // pred_fallthru
      _
    // Predicated region
    $region10: #{tpu_custom_call.1} parent=1 // pred_check
      _
    $region11: #{tpu_custom_call.1} parent=1 // pred_check_branch
      %15 = sbr.rel (0) target = $region13
    $region12: #{tpu_custom_call.1} parent=1 // pred_region
      _
    $region13: #{tpu_custom_call.1} parent=1 // pred_fallthru
      _
    // Predicated region
    $region14: #{tpu_custom_call.1} parent=1 // pred_check
      _
    $region15: #{tpu_custom_call.1} parent=1 // pred_check_branch
      %17 = sbr.rel (0) target = $region17
    $region16: #{tpu_custom_call.1} parent=1 // pred_region
      _
    $region17: #{tpu_custom_call.1} parent=1 // pred_fallthru
      _
    %v19 = vld [vmem:[%s0] sm:$0xff]
    %v20 = vld [vmem:[%s0 + $0x8] sm:$0xff]
    %v21 = vld [vmem:[%s0 + $0x10] sm:$0xff]
    %v22 = vld [vmem:[%s0 + $0x18] sm:$0xff]
    %v23 = vld [vmem:[%s0 + $0x20] sm:$0xff]
    %v24 = vld [vmem:[%s0 + $0x28] sm:$0xff]
    %v25 = vld [vmem:[%s0 + $0x30] sm:$0xff]
    %v26 = vld [vmem:[%s0 + $0x38] sm:$0xff]
    %v27 = vpack.c.bf16 %v20, %v19
    %v28 = vpack.c.bf16 %v22, %v21
    %v29 = vpack.c.bf16 %v24, %v23
    %v30 = vpack.c.bf16 %v26, %v25
    %31 = vxpose.xlu0.c.b16.start [1/8] %v27, 128
    %32 = vxpose.xlu0.c.b16.cont [2/8] %v28, 128
    %33 = vxpose.xlu0.c.b16.cont [3/8] 0, 128
    %34 = vxpose.xlu0.c.b16.cont [4/8] 0, 128
    %35 = vxpose.xlu0.c.b16.cont [5/8] 0, 128
    %36 = vxpose.xlu0.c.b16.cont [6/8] 0, 128
    %37 = vxpose.xlu0.c.b16.cont [7/8] 0, 128
    %38 = vxpose.xlu0.c.b16.end [8/8] 0, 128
    %v39 = vpop.trf.xlu0
    %v40 = vpop.trf.xlu0
    %v41 = vpop.trf.xlu0
    %v42 = vpop.trf.xlu0
    %v43 = vpop.trf.xlu0
    %v44 = vpop.trf.xlu0
    %v45 = vpop.trf.xlu0
    %v46 = vpop.trf.xlu0
    %47 = vxpose.xlu0.c.b16.start [1/8] %v29, 128
    %48 = vxpose.xlu0.c.b16.cont [2/8] %v30, 128
    %49 = vxpose.xlu0.c.b16.cont [3/8] 0, 128
    %50 = vxpose.xlu0.c.b16.cont [4/8] 0, 128
    %51 = vxpose.xlu0.c.b16.cont [5/8] 0, 128
    %52 = vxpose.xlu0.c.b16.cont [6/8] 0, 128
    %53 = vxpose.xlu0.c.b16.cont [7/8] 0, 128
    %54 = vxpose.xlu0.c.b16.end [8/8] 0, 128
    %v55 = vpop.trf.xlu0
    %v56 = vpop.trf.xlu0
    %v57 = vpop.trf.xlu0
    %v58 = vpop.trf.xlu0
    %v59 = vpop.trf.xlu0
    %v60 = vpop.trf.xlu0
    %v61 = vpop.trf.xlu0
    %v62 = vpop.trf.xlu0
    %v63 = vld [vmem:[%s1] sm:$0xff]
    %v64 = vld [vmem:[%s1 + $0x8] sm:$0xff]
    %v65 = vld [vmem:[%s1 + $0x10] sm:$0xff]
    %v66 = vld [vmem:[%s1 + $0x18] sm:$0xff]
    %v67 = vld [vmem:[%s1 + $0x20] sm:$0xff]
    %v68 = vld [vmem:[%s1 + $0x28] sm:$0xff]
    %v69 = vld [vmem:[%s1 + $0x30] sm:$0xff]
    %v70 = vld [vmem:[%s1 + $0x38] sm:$0xff]
    %v71 = vpack.c.bf16 %v64, %v63
    %v72 = vpack.c.bf16 %v66, %v65
    %v73 = vpack.c.bf16 %v68, %v67
    %v74 = vpack.c.bf16 %v70, %v69
    %75 = vxpose.xlu0.c.b16.start [1/8] %v71, 128
    %76 = vxpose.xlu0.c.b16.cont [2/8] %v72, 128
    %77 = vxpose.xlu0.c.b16.cont [3/8] 0, 128
    %78 = vxpose.xlu0.c.b16.cont [4/8] 0, 128
    %79 = vxpose.xlu0.c.b16.cont [5/8] 0, 128
    %80 = vxpose.xlu0.c.b16.cont [6/8] 0, 128
    %81 = vxpose.xlu0.c.b16.cont [7/8] 0, 128
    %82 = vxpose.xlu0.c.b16.end [8/8] 0, 128
    %v83 = vpop.trf.xlu0
    %v84 = vpop.trf.xlu0
    %v85 = vpop.trf.xlu0
    %v86 = vpop.trf.xlu0
    %v87 = vpop.trf.xlu0
    %v88 = vpop.trf.xlu0
    %v89 = vpop.trf.xlu0
    %v90 = vpop.trf.xlu0
    %91 = vxpose.xlu0.c.b16.start [1/8] %v73, 128
    %92 = vxpose.xlu0.c.b16.cont [2/8] %v74, 128
    %93 = vxpose.xlu0.c.b16.cont [3/8] 0, 128
    %94 = vxpose.xlu0.c.b16.cont [4/8] 0, 128
    %95 = vxpose.xlu0.c.b16.cont [5/8] 0, 128
    %96 = vxpose.xlu0.c.b16.cont [6/8] 0, 128
    %97 = vxpose.xlu0.c.b16.cont [7/8] 0, 128
    %98 = vxpose.xlu0.c.b16.end [8/8] 0, 128
    %v99 = vpop.trf.xlu0
    %v100 = vpop.trf.xlu0
    %v101 = vpop.trf.xlu0
    %v102 = vpop.trf.xlu0
    %v103 = vpop.trf.xlu0
    %v104 = vpop.trf.xlu0
    %v105 = vpop.trf.xlu0
    %v106 = vpop.trf.xlu0
    %v107 = vld [vmem:[%s2] sm:$0xf]
    %v108 = vld [vmem:[%s2 + $0xc] sm:$0xf]
    %v109 = vld [vmem:[%s2 + $0x18] sm:$0xf]
    %v110 = vld [vmem:[%s2 + $0x24] sm:$0xf]
    %v111 = vld [vmem:[%s2 + $0x4] sm:$0xff]
    %v112 = vld [vmem:[%s2 + $0x10] sm:$0xff]
    %v113 = vld [vmem:[%s2 + $0x1c] sm:$0xff]
    %v114 = vld [vmem:[%s2 + $0x28] sm:$0xff]
    %v115 = vld [vmem:[%s3] sm:$0x1]
    %v116 = vld [vmem:[%s3 + $0x1] sm:$0x3]
    %v118 = vlaneseq
    %v119 = vshrl.u32 %v118, 7
    %v120 = vsub.s32 0, %v119
    %v121 = vrot.slane %v115, %v120
    %v127 = vunpack.c.l.b16 %v107
    %v128 = vunpack.c.l.b16 %v108
    %v129 = vunpack.c.l.b16 %v109
    %v130 = vunpack.c.l.b16 %v110
    %v131 = vpack.c.b16 %v128, %v127
    %v132 = vpack.c.b16 %v130, %v129
    %vm135 = vcmask 261120
    %v137 = vsel %vm135, %v39, 0
    %v140 = vsel %vm135, %v55, 0
    %142 = vmatprep.subr.bf16.mxu0 0
    %143 = vmatpush1.bf16.msra.mxu0 0
    %144 = vmatprep.subr.bf16.mxu0 0
    %145 = vmatpush1.bf16.msra.mxu0 0
    %146 = vmatprep.subr.bf16.mxu0 0
    %147 = vmatpush1.bf16.msra.mxu0 0
    %148 = vmatprep.subr.bf16.mxu0 0
    %149 = vmatpush1.bf16.msra.mxu0 0
    %150 = vmatprep.subr.bf16.mxu0 0
    %151 = vmatpush1.bf16.msra.mxu0 0
    %152 = vmatprep.subr.bf16.mxu0 0
    %153 = vmatpush1.bf16.msra.mxu0 0
    %154 = vmatprep.subr.bf16.mxu0 0
    %155 = vmatpush1.bf16.msra.mxu0 %v132
    %156 = vmatprep.subr.bf16.mxu0 0
    %157 = vmatpush1.bf16.msra.mxu0 %v131
    %158 = vmatprep.subr.bf16.mxu0 0
    %159 = vmatpush2.bf16.msra.mxu0 0
    %160 = vmatprep.subr.bf16.mxu0 0
    %161 = vmatpush2.bf16.msra.mxu0 0
    %162 = vmatprep.subr.bf16.mxu0 0
    %163 = vmatpush2.bf16.msra.mxu0 0
    %164 = vmatprep.subr.bf16.mxu0 0
    %165 = vmatpush2.bf16.msra.mxu0 0
    %166 = vmatprep.subr.bf16.mxu0 0
    %167 = vmatpush2.bf16.msra.mxu0 0
    %168 = vmatprep.subr.bf16.mxu0 0
    %169 = vmatpush2.bf16.msra.mxu0 0
    %170 = vmatprep.subr.bf16.mxu0 0
    %171 = vmatpush2.bf16.msra.mxu0 0
    %172 = vmatprep.subr.bf16.mxu0 0
    %173 = vmatpush2.bf16.msra.mxu0 0
    %174 = vmatprep.mubr.bf16.mxu0 0
    %175 = vmatmul.mubr.bf16.gmra.mxu0 %v137
    %v176 = vpop.f32.mrf.mxu0
    %v177 = vadd.f32 %v121, %v176
    %v178 = vpop.f32.mrf.mxu0
    %v179 = vpop.f32.mrf.mxu0
    %v180 = vadd.f32 %v121, %v179
    %v181 = vpop.f32.mrf.mxu0
    %182 = vmatprep.mubr.bf16.mxu0 0
    %183 = vmatmul.mubr.bf16.gmra.mxu0 %v140
    %v184 = vpop.f32.mrf.mxu0
    %v185 = vadd.f32 %v121, %v184
    %v186 = vpop.f32.mrf.mxu0
    %v187 = vpop.f32.mrf.mxu0
    %v188 = vadd.f32 %v121, %v187
    %v189 = vpop.f32.mrf.mxu0
    %190 = vdwg.mxu0
    %v192 = vlaneseq
    %v193 = vshrl.u32 %v192, 7
    %v194 = vsub.s32 0, %v193
    %v195 = vrot.slane %v116, %v194
    %v196 = vlaneseq
    %v197 = vshrl.u32 %v196, 7
    %v198 = vsub.s32 1, %v197
    %v199 = vrot.slane %v116, %v198
    %v206 = vunpack.c.l.b16 %v111
    %v207 = vunpack.c.h.b16 %v111
    %v208 = vunpack.c.l.b16 %v112
    %v209 = vunpack.c.h.b16 %v112
    %v210 = vunpack.c.l.b16 %v113
    %v211 = vunpack.c.h.b16 %v113
    %v212 = vunpack.c.l.b16 %v114
    %v213 = vunpack.c.h.b16 %v114
    %v214 = vpack.c.b16 %v208, %v206
    %v215 = vpack.c.b16 %v209, %v207
    %v216 = vpack.c.b16 %v212, %v210
    %v217 = vpack.c.b16 %v213, %v211
    %v223 = vsel %vm135, %v83, 0
    %v226 = vsel %vm135, %v99, 0
    %228 = vmatprep.subr.bf16.mxu0 0
    %229 = vmatpush1.bf16.msra.mxu0 0
    %230 = vmatprep.subr.bf16.mxu0 0
    %231 = vmatpush1.bf16.msra.mxu0 0
    %232 = vmatprep.subr.bf16.mxu0 0
    %233 = vmatpush1.bf16.msra.mxu0 0
    %234 = vmatprep.subr.bf16.mxu0 0
    %235 = vmatpush1.bf16.msra.mxu0 0
    %236 = vmatprep.subr.bf16.mxu0 0
    %237 = vmatpush1.bf16.msra.mxu0 0
    %238 = vmatprep.subr.bf16.mxu0 0
    %239 = vmatpush1.bf16.msra.mxu0 0
    %240 = vmatprep.subr.bf16.mxu0 %v217
    %241 = vmatpush1.bf16.msra.mxu0 %v216
    %242 = vmatprep.subr.bf16.mxu0 %v215
    %243 = vmatpush1.bf16.msra.mxu0 %v214
    %244 = vmatprep.subr.bf16.mxu0 0
    %245 = vmatpush2.bf16.msra.mxu0 0
    %246 = vmatprep.subr.bf16.mxu0 0
    %247 = vmatpush2.bf16.msra.mxu0 0
    %248 = vmatprep.subr.bf16.mxu0 0
    %249 = vmatpush2.bf16.msra.mxu0 0
    %250 = vmatprep.subr.bf16.mxu0 0
    %251 = vmatpush2.bf16.msra.mxu0 0
    %252 = vmatprep.subr.bf16.mxu0 0
    %253 = vmatpush2.bf16.msra.mxu0 0
    %254 = vmatprep.subr.bf16.mxu0 0
    %255 = vmatpush2.bf16.msra.mxu0 0
    %256 = vmatprep.subr.bf16.mxu0 0
    %257 = vmatpush2.bf16.msra.mxu0 0
    %258 = vmatprep.subr.bf16.mxu0 0
    %259 = vmatpush2.bf16.msra.mxu0 0
    %260 = vmatprep.mubr.bf16.mxu0 0
    %261 = vmatmul.mubr.bf16.gmra.mxu0 %v223
    %v262 = vpop.f32.mrf.mxu0
    %v263 = vadd.f32 %v195, %v262
    %v264 = vpop.f32.mrf.mxu0
    %v265 = vadd.f32 %v199, %v264
    %v266 = vpop.f32.mrf.mxu0
    %v267 = vadd.f32 %v195, %v266
    %v268 = vpop.f32.mrf.mxu0
    %v269 = vadd.f32 %v199, %v268
    %270 = vmatprep.mubr.bf16.mxu0 0
    %271 = vmatmul.mubr.bf16.gmra.mxu0 %v226
    %v272 = vpop.f32.mrf.mxu0
    %v273 = vadd.f32 %v195, %v272
    %v274 = vpop.f32.mrf.mxu0
    %v275 = vadd.f32 %v199, %v274
    %v276 = vpop.f32.mrf.mxu0
    %v277 = vadd.f32 %v195, %v276
    %v278 = vpop.f32.mrf.mxu0
    %v279 = vadd.f32 %v199, %v278
    %280 = vdwg.mxu0
    %v281 = vpack.c.bf16 %v180, %v177
    %v282 = vpack.c.bf16 %v188, %v185
    %v283 = vpack.c.bf16 %v267, %v263
    %v284 = vpack.c.bf16 %v277, %v273
    %v285 = vpack.c.bf16 %v269, %v265
    %v286 = vpack.c.bf16 %v279, %v275
    %287 = vmatprep.subr.bf16.mxu0 0
    %288 = vmatpush1.bf16.xpose.msra.mxu0 0
    %289 = vmatprep.subr.bf16.mxu0 0
    %290 = vmatpush1.bf16.xpose.msra.mxu0 0
    %291 = vmatprep.subr.bf16.mxu0 0
    %292 = vmatpush1.bf16.xpose.msra.mxu0 0
    %293 = vmatprep.subr.bf16.mxu0 0
    %294 = vmatpush1.bf16.xpose.msra.mxu0 0
    %295 = vmatprep.subr.bf16.mxu0 0
    %296 = vmatpush1.bf16.xpose.msra.mxu0 0
    %297 = vmatprep.subr.bf16.mxu0 0
    %298 = vmatpush1.bf16.xpose.msra.mxu0 0
    %299 = vmatprep.subr.bf16.mxu0 0
    %300 = vmatpush1.bf16.xpose.msra.mxu0 0
    %301 = vmatprep.subr.bf16.mxu0 0
    %302 = vmatpush1.bf16.xpose.msra.mxu0 %v283
    %303 = vmatprep.subr.bf16.mxu0 0
    %304 = vmatpush2.bf16.xpose.msra.mxu0 0
    %305 = vmatprep.subr.bf16.mxu0 0
    %306 = vmatpush2.bf16.xpose.msra.mxu0 0
    %307 = vmatprep.subr.bf16.mxu0 0
    %308 = vmatpush2.bf16.xpose.msra.mxu0 0
    %309 = vmatprep.subr.bf16.mxu0 0
    %310 = vmatpush2.bf16.xpose.msra.mxu0 0
    %311 = vmatprep.subr.bf16.mxu0 0
    %312 = vmatpush2.bf16.xpose.msra.mxu0 0
    %313 = vmatprep.subr.bf16.mxu0 0
    %314 = vmatpush2.bf16.xpose.msra.mxu0 0
    %315 = vmatprep.subr.bf16.mxu0 0
    %316 = vmatpush2.bf16.xpose.msra.mxu0 0
    %317 = vmatprep.subr.bf16.mxu0 0
    %318 = vmatpush2.bf16.xpose.msra.mxu0 0
    %319 = vmatprep.mubr.bf16.mxu0 0
    %320 = vmatmul.mubr.bf16.gmra.mxu0 %v281
    %v321 = vpop.f32.mrf.mxu0
    %v322 = vadd.f32 0.0, %v321
    %v323 = vpop.f32.mrf.mxu0
    %v324 = vpop.f32.mrf.mxu0
    %v325 = vadd.f32 0.0, %v324
    %v326 = vpop.f32.mrf.mxu0
    %327 = vdwg.mxu0
    %328 = vmatprep.subr.bf16.mxu0 0
    %329 = vmatpush1.bf16.xpose.msra.mxu0 0
    %330 = vmatprep.subr.bf16.mxu0 0
    %331 = vmatpush1.bf16.xpose.msra.mxu0 0
    %332 = vmatprep.subr.bf16.mxu0 0
    %333 = vmatpush1.bf16.xpose.msra.mxu0 0
    %334 = vmatprep.subr.bf16.mxu0 0
    %335 = vmatpush1.bf16.xpose.msra.mxu0 0
    %336 = vmatprep.subr.bf16.mxu0 0
    %337 = vmatpush1.bf16.xpose.msra.mxu0 0
    %338 = vmatprep.subr.bf16.mxu0 0
    %339 = vmatpush1.bf16.xpose.msra.mxu0 0
    %340 = vmatprep.subr.bf16.mxu0 0
    %341 = vmatpush1.bf16.xpose.msra.mxu0 0
    %342 = vmatprep.subr.bf16.mxu0 0
    %343 = vmatpush1.bf16.xpose.msra.mxu0 %v284
    %344 = vmatprep.subr.bf16.mxu0 0
    %345 = vmatpush2.bf16.xpose.msra.mxu0 0
    %346 = vmatprep.subr.bf16.mxu0 0
    %347 = vmatpush2.bf16.xpose.msra.mxu0 0
    %348 = vmatprep.subr.bf16.mxu0 0
    %349 = vmatpush2.bf16.xpose.msra.mxu0 0
    %350 = vmatprep.subr.bf16.mxu0 0
    %351 = vmatpush2.bf16.xpose.msra.mxu0 0
    %352 = vmatprep.subr.bf16.mxu0 0
    %353 = vmatpush2.bf16.xpose.msra.mxu0 0
    %354 = vmatprep.subr.bf16.mxu0 0
    %355 = vmatpush2.bf16.xpose.msra.mxu0 0
    %356 = vmatprep.subr.bf16.mxu0 0
    %357 = vmatpush2.bf16.xpose.msra.mxu0 0
    %358 = vmatprep.subr.bf16.mxu0 0
    %359 = vmatpush2.bf16.xpose.msra.mxu0 0
    %360 = vmatprep.mubr.bf16.mxu0 0
    %361 = vmatmul.mubr.bf16.gmra.mxu0 %v282
    %v362 = vpop.f32.mrf.mxu0
    %v363 = vadd.f32 0.0, %v362
    %v364 = vpop.f32.mrf.mxu0
    %v365 = vpop.f32.mrf.mxu0
    %v366 = vadd.f32 0.0, %v365
    %v367 = vpop.f32.mrf.mxu0
    %368 = vdwg.mxu0
    %vm369 = vcmask 130048
    %v370 = vsel %vm369, %v322, -inf
    %371 = vmax.xlane.f32.xlu0 %v370
    %v372 = vpop.xlane.xlu0 %371
    %v373 = vsel %vm369, %v325, -inf
    %374 = vmax.xlane.f32.xlu0 %v373
    %v375 = vpop.xlane.xlu0 %374
    %v376 = vsel %vm369, %v363, -inf
    %377 = vmax.xlane.f32.xlu0 %v376
    %v378 = vpop.xlane.xlu0 %377
    %v379 = vsel %vm369, %v366, -inf
    %380 = vmax.xlane.f32.xlu0 %v379
    %v381 = vpop.xlane.xlu0 %380
    %v382 = vsub.f32 %v322, %v372
    %v383 = vsub.f32 %v325, %v375
    %v384 = vsub.f32 %v363, %v378
    %v385 = vsub.f32 %v366, %v381
    %v386 = vmul.f32 %v382, 1.442695
    %v387 = vpow.pop %v386
    %v388 = vmul.f32 %v383, 1.442695
    %v389 = vpow.pop %v388
    %v390 = vmul.f32 %v384, 1.442695
    %v391 = vpow.pop %v390
    %v392 = vmul.f32 %v385, 1.442695
    %v393 = vpow.pop %v392
    %v394 = vsel %vm369, %v387, 0.0
    %395 = vadd.xlane.f32.xlu0 %v394
    %v396 = vpop.xlane.xlu0 %395
    %v397 = vsel %vm369, %v389, 0.0
    %398 = vadd.xlane.f32.xlu0 %v397
    %v399 = vpop.xlane.xlu0 %398
    %v400 = vsel %vm369, %v391, 0.0
    %401 = vadd.xlane.f32.xlu0 %v400
    %v402 = vpop.xlane.xlu0 %401
    %v403 = vsel %vm369, %v393, 0.0
    %404 = vadd.xlane.f32.xlu0 %v403
    %v405 = vpop.xlane.xlu0 %404
    %v406 = vrcp.pop %v396
    %v407 = vrcp.pop %v399
    %v408 = vrcp.pop %v402
    %v409 = vrcp.pop %v405
    %v410 = vmul.f32 %v387, %v406
    %v411 = vmul.f32 %v389, %v407
    %v412 = vmul.f32 %v391, %v408
    %v413 = vmul.f32 %v393, %v409
    %v414 = vpack.c.bf16 %v411, %v410
    %v415 = vpack.c.bf16 %v413, %v412
    %v417 = vsel %vm369, %v414, 0
    %419 = vmatprep.subr.bf16.mxu0 0
    %420 = vmatpush1.bf16.msra.mxu0 0
    %421 = vmatprep.subr.bf16.mxu0 0
    %422 = vmatpush1.bf16.msra.mxu0 0
    %423 = vmatprep.subr.bf16.mxu0 0
    %424 = vmatpush1.bf16.msra.mxu0 0
    %425 = vmatprep.subr.bf16.mxu0 0
    %426 = vmatpush1.bf16.msra.mxu0 0
    %427 = vmatprep.subr.bf16.mxu0 0
    %428 = vmatpush1.bf16.msra.mxu0 0
    %429 = vmatprep.subr.bf16.mxu0 0
    %430 = vmatpush1.bf16.msra.mxu0 0
    %431 = vmatprep.subr.bf16.mxu0 0
    %432 = vmatpush1.bf16.msra.mxu0 0
    %433 = vmatprep.subr.bf16.mxu0 0
    %434 = vmatpush1.bf16.msra.mxu0 %v285
    %435 = vmatprep.subr.bf16.mxu0 0
    %436 = vmatpush2.bf16.msra.mxu0 0
    %437 = vmatprep.subr.bf16.mxu0 0
    %438 = vmatpush2.bf16.msra.mxu0 0
    %439 = vmatprep.subr.bf16.mxu0 0
    %440 = vmatpush2.bf16.msra.mxu0 0
    %441 = vmatprep.subr.bf16.mxu0 0
    %442 = vmatpush2.bf16.msra.mxu0 0
    %443 = vmatprep.subr.bf16.mxu0 0
    %444 = vmatpush2.bf16.msra.mxu0 0
    %445 = vmatprep.subr.bf16.mxu0 0
    %446 = vmatpush2.bf16.msra.mxu0 0
    %447 = vmatprep.subr.bf16.mxu0 0
    %448 = vmatpush2.bf16.msra.mxu0 0
    %449 = vmatprep.subr.bf16.mxu0 0
    %450 = vmatpush2.bf16.msra.mxu0 0
    %451 = vmatprep.mubr.bf16.mxu0 0
    %452 = vmatmul.mubr.bf16.gmra.mxu0 %v417
    %v453 = vpop.f32.mrf.mxu0
    %v454 = vadd.f32 0.0, %v453
    %v455 = vpop.f32.mrf.mxu0
    %v456 = vpop.f32.mrf.mxu0
    %v457 = vadd.f32 0.0, %v456
    %v458 = vpop.f32.mrf.mxu0
    %459 = vdwg.mxu0
    %v461 = vsel %vm369, %v415, 0
    %463 = vmatprep.subr.bf16.mxu0 0
    %464 = vmatpush1.bf16.msra.mxu0 0
    %465 = vmatprep.subr.bf16.mxu0 0
    %466 = vmatpush1.bf16.msra.mxu0 0
    %467 = vmatprep.subr.bf16.mxu0 0
    %468 = vmatpush1.bf16.msra.mxu0 0
    %469 = vmatprep.subr.bf16.mxu0 0
    %470 = vmatpush1.bf16.msra.mxu0 0
    %471 = vmatprep.subr.bf16.mxu0 0
    %472 = vmatpush1.bf16.msra.mxu0 0
    %473 = vmatprep.subr.bf16.mxu0 0
    %474 = vmatpush1.bf16.msra.mxu0 0
    %475 = vmatprep.subr.bf16.mxu0 0
    %476 = vmatpush1.bf16.msra.mxu0 0
    %477 = vmatprep.subr.bf16.mxu0 0
    %478 = vmatpush1.bf16.msra.mxu0 %v286
    %479 = vmatprep.subr.bf16.mxu0 0
    %480 = vmatpush2.bf16.msra.mxu0 0
    %481 = vmatprep.subr.bf16.mxu0 0
    %482 = vmatpush2.bf16.msra.mxu0 0
    %483 = vmatprep.subr.bf16.mxu0 0
    %484 = vmatpush2.bf16.msra.mxu0 0
    %485 = vmatprep.subr.bf16.mxu0 0
    %486 = vmatpush2.bf16.msra.mxu0 0
    %487 = vmatprep.subr.bf16.mxu0 0
    %488 = vmatpush2.bf16.msra.mxu0 0
    %489 = vmatprep.subr.bf16.mxu0 0
    %490 = vmatpush2.bf16.msra.mxu0 0
    %491 = vmatprep.subr.bf16.mxu0 0
    %492 = vmatpush2.bf16.msra.mxu0 0
    %493 = vmatprep.subr.bf16.mxu0 0
    %494 = vmatpush2.bf16.msra.mxu0 0
    %495 = vmatprep.mubr.bf16.mxu0 0
    %496 = vmatmul.mubr.bf16.gmra.mxu0 %v461
    %v497 = vpop.f32.mrf.mxu0
    %v498 = vadd.f32 0.0, %v497
    %v499 = vpop.f32.mrf.mxu0
    %v500 = vpop.f32.mrf.mxu0
    %v501 = vadd.f32 0.0, %v500
    %v502 = vpop.f32.mrf.mxu0
    %503 = vdwg.mxu0
    %v504 = vpack.c.bf16 %v457, %v454
    %v505 = vpack.c.bf16 %v501, %v498
    %v508 = vunpack.c.l.b16 %v504
    %v509 = vunpack.c.h.b16 %v504
    %v510 = vunpack.c.l.b16 %v505
    %v511 = vunpack.c.h.b16 %v505
    %v512 = vpack.c.b16 %v508, %v508
    %v513 = vpack.c.b16 %v509, %v509
    %v514 = vpack.c.b16 %v510, %v510
    %v515 = vpack.c.b16 %v511, %v511
    %520 = vst [vmem:[#allocation2] sm:$0xf] %v512
    %521 = vst [vmem:[#allocation2 + $0x4] sm:$0xf] %v513
    %522 = vst [vmem:[#allocation2 + $0x8] sm:$0xf] %v514
    %523 = vst [vmem:[#allocation2 + $0xc] sm:$0xf] %v515
    // Predicated region
    $region18: #{tpu_custom_call.1} parent=1 // pred_check
      _
    $region19: #{tpu_custom_call.1} parent=1 // pred_check_branch
      %525 = sbr.rel (0) target = $region21
    $region20: #{tpu_custom_call.1} parent=1 // pred_region
      %s527 = ssub.s32 256, 256
      %528 = vsyncadd [#allocation3], %s527
      %s529 = sshll.u32 [#allocation2], 4
      %s530 = int_to_ptr.vmem [resolvable:$true] %s529
      %535 = dma.vmem_to_hbm [thread:$0]  %s530, 256, %s4, [#allocation3], 64, 64, 4
    $region21: #{tpu_custom_call.1} parent=1 // pred_fallthru
      _
    // Predicated region
    $region22: #{tpu_custom_call.1} parent=1 // pred_check
      _
    $region23: #{tpu_custom_call.1} parent=1 // pred_check_branch
      %537 = sbr.rel (0) target = $region25
    $region24: #{tpu_custom_call.1} parent=1 // pred_region
      %538 = dma.done [#allocation3], 256
    $region25: #{tpu_custom_call.1} parent=1 // pred_fallthru
      _
    %539 = vsyncpa [#allocation3], 1

</llo_original>
